<compile_context>
chip_gen: v5e
topology: v5e:2x2
jax: 0.10.0
libtpu: 0.0.40
codegen_flags: <defaults>
</compile_context>

<pallas_src>
import math

import numpy as np
import jax
import jax.numpy as jnp
from jax.experimental import pallas as pl
from jax.experimental.pallas import tpu as pltpu


# ----------------------------- small helpers -----------------------------
def _round_up(x, m):
    return ((x + m - 1) // m) * m


def _cdiv(a, b):
    return (a + b - 1) // b


def _stable_softplus(x):
    # Numerically stable softplus, matches torch.nn.functional.softplus to fp
    # precision (for |x| large the correction term is below f32 epsilon).
    return jnp.maximum(x, 0.0) + jnp.log(1.0 + jnp.exp(-jnp.abs(x)))


def _sublane_multiple(dtype):
    # Native second-minor tile: 8 rows (f32), 16 (bf16), 32 (int8/fp8).
    return max(8, 32 // max(1, jnp.dtype(dtype).itemsize))


def _device_kind():
    try:
        return jax.devices()[0].device_kind.lower()
    except Exception:
        return ""


def _select_config(dtype):
    """Generation-aware (tm, tn, tk, vmem_limit_bytes, is_v7x) targets."""
    itemsize = jnp.dtype(dtype).itemsize
    kind = _device_kind()
    is_v5e = ("v5e" in kind) or ("v5 lite" in kind) or ("v5lite" in kind)
    is_v7 = "v7" in kind
    if is_v5e:
        # ~240 FLOP/byte break-even; 512-wide tiles map cleanly on the 4x128^2 MXU.
        tm, tn, tk = 512, 512, 512
        vmem = 64 * 1024 * 1024
    elif is_v7:
        # 64 MiB VMEM per TC: keep the double-buffered tile-set <= ~48-56 MiB.
        if itemsize <= 2:
            tm, tn, tk = 1024, 2048, 512
        else:
            tm, tn, tk = 512, 2048, 512
        vmem = 56 * 1024 * 1024
    else:
        # v6e (and default): 128 MiB physical VMEM, raise scoped limit.
        tm, tn, tk = 1024, 2048, 512
        vmem = 100 * 1024 * 1024
    return tm, tn, tk, vmem, is_v7


def _fit_tile(dim, target, align):
    """Pick a tile (multiple of `align`, near `target`) minimizing padding of
    `dim`.  Returns (tile, padded_dim) with padded_dim % tile == 0."""
    dim_al = _round_up(max(int(dim), 1), align)
    target = _round_up(max(int(target), align), align)
    if dim_al <= target:
        return dim_al, dim_al
    n = max(1, (dim_al + target // 2) // target)
    tile = _round_up(_cdiv(dim_al, n), align)
    return tile, n * tile


# ------------------- Kernel A: fused softplus + matmul (small-M path) -------------------
def _fused_kernel(x_ref, w_ref, b_ref, o_ref, acc_ref):
    k = pl.program_id(1)

    @pl.when(k == 0)
    def _():
        # Fold the bias into the accumulator init.
        acc_ref[...] = jnp.broadcast_to(
            b_ref[...].astype(jnp.float32), acc_ref.shape)

    # w_ref is a (tn, tk) block of W in its native (out, in) layout; softplus is
    # applied exactly once per element (each weight tile is visited once).
    pw = _stable_softplus(w_ref[...].astype(jnp.float32)).astype(x_ref.dtype)
    acc_ref[...] += jax.lax.dot_general(
        x_ref[...], pw,
        dimension_numbers=(((1,), (1,)), ((), ())),   # contract on last dims (NT matmul)
        preferred_element_type=jnp.float32)

    @pl.when(k == pl.num_programs(1) - 1)
    def _():
        o_ref[...] = acc_ref[...].astype(o_ref.dtype)


# ------------------- Kernel B1: softplus + transpose of W (large-M path) -------------------
def _softplus_transpose_kernel(w_ref, o_ref):
    # w_ref: (tn, tk) block of W (out, in); o_ref: (tk, tn) block of softplus(W)^T.
    # The XLU transpose slot is idle in an elementwise kernel, so this is ~free
    # and deletes the wrapper-side weight.T HBM round-trip.
    w = w_ref[...].astype(jnp.float32)
    o_ref[...] = _stable_softplus(w).T.astype(o_ref.dtype)


# ------------------- Kernel B2: tiled matmul + bias (large-M path) -------------------
def _matmul_bias_kernel(x_ref, w_ref, b_ref, o_ref, acc_ref):
    k = pl.program_id(2)

    @pl.when(k == 0)
    def _():
        acc_ref[...] = jnp.broadcast_to(
            b_ref[...].astype(jnp.float32), acc_ref.shape)

    # x tile: (tm, tk); w tile: (tk, tn) -> MXU, f32 accumulation, no transpose.
    acc_ref[...] += jnp.dot(x_ref[...], w_ref[...],
                            preferred_element_type=jnp.float32)

    @pl.when(k == pl.num_programs(2) - 1)
    def _():
        o_ref[...] = acc_ref[...].astype(o_ref.dtype)


# ----------------------------- wrapper -----------------------------
def positive_linear(x, weight, bias=None, *, tm=None, tn=None, tk=None):
    """x: (..., in_features); weight: (out, in); bias: (out,) or None."""
    out_features, in_features = weight.shape
    lead_shape = x.shape[:-1]
    x2d = x.reshape(-1, in_features)
    M, K, N = x2d.shape[0], in_features, out_features

    dtype = x.dtype
    if bias is None:
        bias = jnp.zeros((N,), dtype)

    tm_t, tn_t, tk_t, vmem_limit, is_v7 = _select_config(dtype)
    if tm is not None:
        tm_t = tm
    if tn is not None:
        tn_t = tn
    if tk is not None:
        tk_t = tk

    sub = _sublane_multiple(dtype)
    tm_, Mp = _fit_tile(M, tm_t, sub)
    tn_, Np = _fit_tile(N, tn_t, 128)
    tk_, Kp = _fit_tile(K, tk_t, 128)

    # v7x megacore: if both parallel axes collapse to a single block, split M so
    # both TensorCores get grid work.
    if is_v7 and tm is None and (Mp // tm_) * (Np // tn_) == 1 and tm_ > sub:
        tm_ = max(sub, _round_up(_cdiv(M, 2), sub))
        Mp = _round_up(M, tm_)

    gm, gn, gk = Mp // tm_, Np // tn_, Kp // tk_

    # Zero padding is safe: padded K columns of x are zero, so the softplus(0)
    # values in padded weight rows contribute nothing; padded M/N are sliced off.
    # Padding ops are skipped entirely when shapes are already aligned.
    xp = x2d if (Mp == M and Kp == K) else jnp.pad(x2d, ((0, Mp - M), (0, Kp - K)))
    wp = weight if (Np == N and Kp == K) else jnp.pad(weight, ((0, Np - N), (0, Kp - K)))
    b2d = bias.reshape(1, N)
    bp = b2d if Np == N else jnp.pad(b2d, ((0, 0), (0, Np - N)))

    x_items = jnp.dtype(dtype).itemsize
    w_items = jnp.dtype(weight.dtype).itemsize
    b_items = jnp.dtype(bp.dtype).itemsize

    if gm == 1:
        # --- small-M / decode regime: fuse softplus into the matmul ---
        out = pl.pallas_call(
            _fused_kernel,
            out_shape=jax.ShapeDtypeStruct((Mp, Np), dtype),
            grid_spec=pltpu.PrefetchScalarGridSpec(
                num_scalar_prefetch=0,
                grid=(gn, gk),
                in_specs=[
                    pl.BlockSpec((Mp, tk_), lambda j, k: (0, k)),
                    pl.BlockSpec((tn_, tk_), lambda j, k: (j, k)),
                    pl.BlockSpec((1, tn_), lambda j, k: (0, j)),
                ],
                out_specs=pl.BlockSpec((Mp, tn_), lambda j, k: (0, j)),
                scratch_shapes=[pltpu.VMEM((Mp, tn_), jnp.float32)],
            ),
            compiler_params=pltpu.CompilerParams(
                dimension_semantics=("parallel", "arbitrary"),
                vmem_limit_bytes=vmem_limit),
            cost_estimate=pl.CostEstimate(
                flops=2 * Mp * Np * Kp + 3 * Np * Kp,
                transcendentals=2 * Np * Kp,
                bytes_accessed=(Mp * Kp * x_items + Kp * Np * w_items
                                + Mp * Np * x_items + Np * b_items)),
        )(xp, wp, bp)
    else:
        # --- large-M regime: one softplus+transpose pass, then tiled matmul ---
        pw = pl.pallas_call(
            _softplus_transpose_kernel,
            out_shape=jax.ShapeDtypeStruct((Kp, Np), dtype),
            grid_spec=pltpu.PrefetchScalarGridSpec(
                num_scalar_prefetch=0,
                grid=(gk, gn),
                in_specs=[pl.BlockSpec((tn_, tk_), lambda k, j: (j, k))],
                out_specs=pl.BlockSpec((tk_, tn_), lambda k, j: (k, j)),
            ),
            compiler_params=pltpu.CompilerParams(
                dimension_semantics=("parallel", "parallel"),
                vmem_limit_bytes=vmem_limit),
            cost_estimate=pl.CostEstimate(
                flops=3 * Kp * Np,
                transcendentals=2 * Kp * Np,
                bytes_accessed=Kp * Np * (w_items + x_items)),
        )(wp)

        out = pl.pallas_call(
            _matmul_bias_kernel,
            out_shape=jax.ShapeDtypeStruct((Mp, Np), dtype),
            grid_spec=pltpu.PrefetchScalarGridSpec(
                num_scalar_prefetch=0,
                grid=(gm, gn, gk),
                in_specs=[
                    pl.BlockSpec((tm_, tk_), lambda i, j, k: (i, k)),
                    pl.BlockSpec((tk_, tn_), lambda i, j, k: (k, j)),
                    pl.BlockSpec((1, tn_), lambda i, j, k: (0, j)),
                ],
                out_specs=pl.BlockSpec((tm_, tn_), lambda i, j, k: (i, j)),
                scratch_shapes=[pltpu.VMEM((tm_, tn_), jnp.float32)],
            ),
            compiler_params=pltpu.CompilerParams(
                dimension_semantics=("parallel", "parallel", "arbitrary"),
                vmem_limit_bytes=vmem_limit),
            cost_estimate=pl.CostEstimate(
                flops=2 * Mp * Np * Kp,
                transcendentals=0,
                bytes_accessed=((Mp * Kp + Kp * Np + Mp * Np) * x_items
                                + Np * b_items)),
        )(xp, pw, bp)

    return out[:M, :N].reshape(*lead_shape, N)


# ----------------------------- init (reset_parameters emulation) -----------------------------
def init_params(key, in_features, out_features, weight_init_offset=-2):
    """Deterministic emulation of PositiveLinear.reset_parameters()."""
    kw, kb = jax.random.split(key)
    fan_in = in_features
    w_bound = 1.0 / math.sqrt(fan_in)          # kaiming_uniform_(a=sqrt(5))
    weight = jax.random.uniform(
        kw, (out_features, in_features), jnp.float32, -w_bound, w_bound)
    weight = weight + weight_init_offset
    b_bound = 1.0 / math.sqrt(fan_in) if fan_in > 0 else 0.0
    bias = jax.random.uniform(kb, (out_features,), jnp.float32, -b_bound, b_bound)
    return weight, bias


def _ref_numpy(x, weight, bias):
    # float64 host reference: softplus(W) via logaddexp for stability.
    xw = np.asarray(x, np.float64)
    sw = np.logaddexp(0.0, np.asarray(weight, np.float64))
    return xw @ sw.T + np.asarray(bias, np.float64)


if __name__ == "__main__":
    key = jax.random.PRNGKey(0)
    k_x1, k_x2, k_p = jax.random.split(key, 3)

    in_features, out_features = 32, 16
    weight, bias = init_params(k_p, in_features, out_features)

    # 1) small-M (fused softplus + matmul) path, with leading batch dims.
    x1 = jax.random.normal(k_x1, (2, 4, in_features), jnp.float32)
    y1 = jax.block_until_ready(positive_linear(x1, weight, bias))
    ref1 = _ref_numpy(x1, weight, bias)
    assert y1.shape == (2, 4, out_features)
    assert np.allclose(np.asarray(y1, np.float64), ref1, atol=2e-2, rtol=2e-2), \
        "fused-path mismatch vs reference"

    # 2) two-pass path (softplus+transpose kernel, then tiled matmul), forced by
    #    small tile overrides so the M grid has several blocks.
    x2 = jax.random.normal(k_x2, (32, in_features), jnp.float32)
    y2 = jax.block_until_ready(
        positive_linear(x2, weight, bias, tm=8, tn=128, tk=128))
    ref2 = _ref_numpy(x2, weight, bias)
    assert y2.shape == (32, out_features)
    assert np.allclose(np.asarray(y2, np.float64), ref2, atol=2e-2, rtol=2e-2), \
        "two-pass-path mismatch vs reference"

    print("KERNEL_OK")
</pallas_src>

<mosaic_0001>
module attributes {stable_mosaic.version = 11 : i64} {
  func.func @_fused_kernel(%arg0: i32, %arg1: i32, %arg2: memref<8x128xf32, #tpu.memory_space<vmem>>, %arg3: memref<128x128xf32, #tpu.memory_space<vmem>>, %arg4: memref<1x128xf32, #tpu.memory_space<vmem>>, %arg5: memref<8x128xf32, #tpu.memory_space<vmem>>, %arg6: memref<8x128xf32, #tpu.memory_space<vmem>>) attributes {dimension_semantics = [#tpu.dimension_semantics<parallel>, #tpu.dimension_semantics<arbitrary>], iteration_bounds = array<i64: 1, 1>, scalar_prefetch = 0 : i64, scratch_operands = 1 : i64, tpu.core_type = #tpu.core_type<tc>, window_params = [{transform_indices = @transform_0, window_bounds = array<i64: 8, 128>}, {transform_indices = @transform_1, window_bounds = array<i64: 128, 128>}, {transform_indices = @transform_2, window_bounds = array<i64: 1, 128>}, {transform_indices = @transform_3, window_bounds = array<i64: 8, 128>}]} {
    %c0_i32 = arith.constant 0 : i32
    %0 = arith.cmpi eq, %arg1, %c0_i32 : i32
    %1 = arith.extui %0 : i1 to i32
    %c0_i32_0 = arith.constant 0 : i32
    %2 = arith.cmpi ne, %1, %c0_i32_0 : i32
    scf.if %2 {
      %c0_13 = arith.constant 0 : index
      %c0_14 = arith.constant 0 : index
      %22 = vector.load %arg4[%c0_13, %c0_14] : memref<1x128xf32, #tpu.memory_space<vmem>>, vector<1x128xf32>
      %23 = vector.shape_cast %22 : vector<1x128xf32> to vector<1x128xf32>
      %24 = vector.broadcast %23 : vector<1x128xf32> to vector<8x128xf32>
      %c0_15 = arith.constant 0 : index
      %c0_16 = arith.constant 0 : index
      %25 = vector.load %arg6[%c0_15, %c0_16] : memref<8x128xf32, #tpu.memory_space<vmem>>, vector<8x128xf32>
      tpu.vector_store %arg6[%c0_15, %c0_16], %24 {strides = array<i32>} : memref<8x128xf32, #tpu.memory_space<vmem>>, vector<8x128xf32>,
    } else {
    }
    %c0 = arith.constant 0 : index
    %c0_1 = arith.constant 0 : index
    %3 = vector.load %arg3[%c0, %c0_1] : memref<128x128xf32, #tpu.memory_space<vmem>>, vector<128x128xf32>
    %cst = arith.constant 0.000000e+00 : f32
    %4 = vector.broadcast %cst : f32 to vector<128x128xf32>
    %5 = arith.maximumf %3, %4 : vector<128x128xf32>
    %6 = math.absf %3 : vector<128x128xf32>
    %cst_2 = arith.constant 0.000000e+00 : f32
    %7 = vector.broadcast %cst_2 : f32 to vector<128x128xf32>
    %8 = arith.subf %7, %6 : vector<128x128xf32>
    %9 = math.exp %8 : vector<128x128xf32>
    %cst_3 = arith.constant 1.000000e+00 : f32
    %10 = vector.broadcast %cst_3 : f32 to vector<128x128xf32>
    %11 = arith.addf %10, %9 : vector<128x128xf32>
    %12 = math.log %11 : vector<128x128xf32>
    %13 = arith.addf %5, %12 : vector<128x128xf32>
    %c0_4 = arith.constant 0 : index
    %c0_5 = arith.constant 0 : index
    %14 = vector.load %arg6[%c0_4, %c0_5] : memref<8x128xf32, #tpu.memory_space<vmem>>, vector<8x128xf32>
    %c0_6 = arith.constant 0 : index
    %c0_7 = arith.constant 0 : index
    %15 = vector.load %arg2[%c0_6, %c0_7] : memref<8x128xf32, #tpu.memory_space<vmem>>, vector<8x128xf32>
    %cst_8 = arith.constant dense<0.000000e+00> : vector<8x128xf32>
    %16 = tpu.matmul %15, %13, %cst_8 {dimension_numbers = #tpu.dot_dimension_numbers<[1], [1], [0], [0], [0, 0, 1, 0], [], []>} : vector<8x128xf32>, vector<128x128xf32>, vector<8x128xf32> -> vector<8x128xf32>
    %17 = arith.addf %14, %16 : vector<8x128xf32>
    %c0_9 = arith.constant 0 : index
    %c0_10 = arith.constant 0 : index
    %18 = vector.load %arg6[%c0_9, %c0_10] : memref<8x128xf32, #tpu.memory_space<vmem>>, vector<8x128xf32>
    tpu.vector_store %arg6[%c0_9, %c0_10], %17 {strides = array<i32>} : memref<8x128xf32, #tpu.memory_space<vmem>>, vector<8x128xf32>,
    %c0_i32_11 = arith.constant 0 : i32
    %19 = arith.cmpi eq, %arg1, %c0_i32_11 : i32
    %20 = arith.extui %19 : i1 to i32
    %c0_i32_12 = arith.constant 0 : i32
    %21 = arith.cmpi ne, %20, %c0_i32_12 : i32
    scf.if %21 {
      %c0_13 = arith.constant 0 : index
      %c0_14 = arith.constant 0 : index
      %22 = vector.load %arg6[%c0_13, %c0_14] : memref<8x128xf32, #tpu.memory_space<vmem>>, vector<8x128xf32>
      %c0_15 = arith.constant 0 : index
      %c0_16 = arith.constant 0 : index
      %23 = vector.load %arg5[%c0_15, %c0_16] : memref<8x128xf32, #tpu.memory_space<vmem>>, vector<8x128xf32>
      tpu.vector_store %arg5[%c0_15, %c0_16], %22 {strides = array<i32>} : memref<8x128xf32, #tpu.memory_space<vmem>>, vector<8x128xf32>,
    } else {
    }
    return
  }
  func.func @transform_0(%arg0: i32, %arg1: i32) -> (i32, i32) {
    %c0_i32 = arith.constant 0 : i32
    %c0_i32_0 = arith.constant 0 : i32
    return %c0_i32, %arg1 : i32, i32
  }
  func.func @transform_1(%arg0: i32, %arg1: i32) -> (i32, i32) {
    %c0_i32 = arith.constant 0 : i32
    return %arg0, %arg1 : i32, i32
  }
  func.func @transform_2(%arg0: i32, %arg1: i32) -> (i32, i32) {
    %c0_i32 = arith.constant 0 : i32
    %c0_i32_0 = arith.constant 0 : i32
    return %c0_i32, %arg0 : i32, i32
  }
  func.func @transform_3(%arg0: i32, %arg1: i32) -> (i32, i32) {
    %c0_i32 = arith.constant 0 : i32
    %c0_i32_0 = arith.constant 0 : i32
    return %c0_i32, %arg0 : i32, i32
  }
}

</mosaic_0001>

<llo_original>
// kernel: tpu_custom_call.1
$region0: #{tpu_custom_call.1}
  #allocation0 [shape = 'u32[]', space=smem, size = 0x4, offset = 0x4, fixed_abs, tag = 'smem constant byte address 0x4 - core index']
  #allocation1 [shape = 'u32[72,128]{1,0:T(1,128)}', space=vmem, size = 0x9000, scoped, tag = 'internal scratch']
  #allocation2 [shape = 'f32[8,128]{1,0:T(8,128)}', space=vmem, size = 0x1000, scoped, tag = 'scratch operand']
  %s0 = inlined_call_operand.hbm [shape: f32[8,128], index: 0, kind: input, shape index: {}]
  %s1 = inlined_call_operand.hbm [shape: f32[128,128], index: 1, kind: input, shape index: {}]
  %s2 = inlined_call_operand.vmem [shape: f32[1,128], index: 2, kind: input, shape index: {}]
  %s3 = inlined_call_operand.hbm [shape: f32[8,128], index: 3, kind: output, shape index: {}]
  %s4 = sld [smem:[#allocation0]]
  $region38: #{tpu_custom_call.1} parent=0
    _
  %s6 = ssub.s32 1, %s4
  %s7 = scalar_select 0, %s6, %s4
  $region1: #{tpu_custom_call.1} parent=0
    #allocation3 [shape = 'u8[4096]{0}', space=vmem, size = 0x1000, scoped, tag = 'input window, operand 0, single buffered']
    #allocation4 [shape = 's32[1]{0}', space=sflag, size = 0x4, scoped, tag = 'scoped memory for tpu_custom_call.1']
    #allocation5 [shape = 's32[1]{0}', space=sflag, size = 0x4, scoped, tag = 'scoped memory for tpu_custom_call.1']
    #allocation6 [shape = 'u8[65536]{0}', space=vmem, size = 0x10000, scoped, tag = 'input window, operand 1, single buffered']
    #allocation7 [shape = 's32[1]{0}', space=sflag, size = 0x4, scoped, tag = 'scoped memory for tpu_custom_call.1']
    #allocation8 [shape = 'u8[4096]{0}', space=vmem, size = 0x1000, scoped, tag = 'output window, operand 0, single buffered']
    %8 = vsyncpa [#allocation4], 0
    %9 = vsyncpa [#allocation7], 0
    %10 = vsyncpa [#allocation5], 0
    // Predicated region
    $region2: #{tpu_custom_call.1} parent=1 // pred_check
      _
    $region3: #{tpu_custom_call.1} parent=1 // pred_check_branch
      %12 = sbr.rel (0) target = $region5
    $region4: #{tpu_custom_call.1} parent=1 // pred_region
      %14 = vsyncadd [#allocation4], 0
      %s16 = sshll.u32 %s0, 4
      %s17 = int_to_ptr.hbm [resolvable:$true] %s16
      %s18 = sshll.u32 [#allocation3], 4
      %s19 = int_to_ptr.vmem [resolvable:$true] %s18
      %21 = dma.hbm_to_vmem [thread:$0]  %s17, 128, %s19, [#allocation4]
    $region5: #{tpu_custom_call.1} parent=1 // pred_fallthru
      _
    // Predicated region
    $region6: #{tpu_custom_call.1} parent=1 // pred_check
      _
    $region7: #{tpu_custom_call.1} parent=1 // pred_check_branch
      %23 = sbr.rel (0) target = $region9
    $region8: #{tpu_custom_call.1} parent=1 // pred_region
      %25 = vsyncadd [#allocation7], 0
      %s26 = sshll.u32 %s1, 4
      %s27 = int_to_ptr.hbm [resolvable:$true] %s26
      %s28 = sshll.u32 [#allocation6], 4
      %s29 = int_to_ptr.vmem [resolvable:$true] %s28
      %34 = dma.hbm_to_vmem [thread:$0]  %s27, 2048, %s29, [#allocation7], 128, 128, 8
    $region9: #{tpu_custom_call.1} parent=1 // pred_fallthru
      _
    // Predicated region
    $region10: #{tpu_custom_call.1} parent=1 // pred_check
      _
    $region11: #{tpu_custom_call.1} parent=1 // pred_check_branch
      %36 = sbr.rel (0) target = $region13
    $region12: #{tpu_custom_call.1} parent=1 // pred_region
      _
    $region13: #{tpu_custom_call.1} parent=1 // pred_fallthru
      _
    // Predicated region
    $region14: #{tpu_custom_call.1} parent=1 // pred_check
      _
    $region15: #{tpu_custom_call.1} parent=1 // pred_check_branch
      %38 = sbr.rel (0) target = $region17
    $region16: #{tpu_custom_call.1} parent=1 // pred_region
      %40 = dma.done [#allocation4], 128
    $region17: #{tpu_custom_call.1} parent=1 // pred_fallthru
      _
    // Predicated region
    $region18: #{tpu_custom_call.1} parent=1 // pred_check
      _
    $region19: #{tpu_custom_call.1} parent=1 // pred_check_branch
      %42 = sbr.rel (0) target = $region21
    $region20: #{tpu_custom_call.1} parent=1 // pred_region
      %44 = dma.done [#allocation7], 2048
    $region21: #{tpu_custom_call.1} parent=1 // pred_fallthru
      _
    %p45 = scmp.eq.s32.totalorder 0, 0
    // Predicated region
    $region22: #{tpu_custom_call.1} parent=1 // pred_check
      %p46 = pneg %p45
    $region23: #{tpu_custom_call.1} parent=1 // pred_check_branch
      %48 = sbr.rel (%p46) target = $region25
    $region24: #{tpu_custom_call.1} parent=1 // pred_region
      %v49 = vld [vmem:[%s2] sm:$0x1]
      %v51 = vperm.slane %v49, 0
      %53 = vst [vmem:[#allocation2] sm:$0xff] %v51
    $region25: #{tpu_custom_call.1} parent=1 // pred_fallthru
      _
    %v54 = vld [vmem:[#allocation6] sm:$0xff]
    %v55 = vld [vmem:[#allocation6 + $0x8] sm:$0xff]
    %v56 = vld [vmem:[#allocation6 + $0x10] sm:$0xff]
    %v57 = vld [vmem:[#allocation6 + $0x18] sm:$0xff]
    %v58 = vld [vmem:[#allocation6 + $0x20] sm:$0xff]
    %v59 = vld [vmem:[#allocation6 + $0x28] sm:$0xff]
    %v60 = vld [vmem:[#allocation6 + $0x30] sm:$0xff]
    %v61 = vld [vmem:[#allocation6 + $0x38] sm:$0xff]
    %v62 = vld [vmem:[#allocation6 + $0x40] sm:$0xff]
    %v63 = vld [vmem:[#allocation6 + $0x48] sm:$0xff]
    %v64 = vld [vmem:[#allocation6 + $0x50] sm:$0xff]
    %v65 = vld [vmem:[#allocation6 + $0x58] sm:$0xff]
    %v66 = vld [vmem:[#allocation6 + $0x60] sm:$0xff]
    %v67 = vld [vmem:[#allocation6 + $0x68] sm:$0xff]
    %v68 = vld [vmem:[#allocation6 + $0x70] sm:$0xff]
    %v69 = vld [vmem:[#allocation6 + $0x78] sm:$0xff]
    %v70 = vmax.f32 %v54, 0.0
    %v71 = vmax.f32 %v55, 0.0
    %v72 = vmax.f32 %v56, 0.0
    %v73 = vmax.f32 %v57, 0.0
    %v74 = vmax.f32 %v58, 0.0
    %v75 = vmax.f32 %v59, 0.0
    %v76 = vmax.f32 %v60, 0.0
    %v77 = vmax.f32 %v61, 0.0
    %v78 = vmax.f32 %v62, 0.0
    %v79 = vmax.f32 %v63, 0.0
    %v80 = vmax.f32 %v64, 0.0
    %v81 = vmax.f32 %v65, 0.0
    %v82 = vmax.f32 %v66, 0.0
    %v83 = vmax.f32 %v67, 0.0
    %v84 = vmax.f32 %v68, 0.0
    %v85 = vmax.f32 %v69, 0.0
    %v86 = vand.u32 2147483647, %v54
    %v87 = vand.u32 2147483647, %v55
    %v88 = vand.u32 2147483647, %v56
    %v89 = vand.u32 2147483647, %v57
    %v90 = vand.u32 2147483647, %v58
    %v91 = vand.u32 2147483647, %v59
    %v92 = vand.u32 2147483647, %v60
    %v93 = vand.u32 2147483647, %v61
    %v94 = vand.u32 2147483647, %v62
    %v95 = vand.u32 2147483647, %v63
    %v96 = vand.u32 2147483647, %v64
    %v97 = vand.u32 2147483647, %v65
    %v98 = vand.u32 2147483647, %v66
    %v99 = vand.u32 2147483647, %v67
    %v100 = vand.u32 2147483647, %v68
    %v101 = vand.u32 2147483647, %v69
    %v102 = vsub.f32 0.0, %v86
    %v103 = vsub.f32 0.0, %v87
    %v104 = vsub.f32 0.0, %v88
    %v105 = vsub.f32 0.0, %v89
    %v106 = vsub.f32 0.0, %v90
    %v107 = vsub.f32 0.0, %v91
    %v108 = vsub.f32 0.0, %v92
    %v109 = vsub.f32 0.0, %v93
    %v110 = vsub.f32 0.0, %v94
    %v111 = vsub.f32 0.0, %v95
    %v112 = vsub.f32 0.0, %v96
    %v113 = vsub.f32 0.0, %v97
    %v114 = vsub.f32 0.0, %v98
    %v115 = vsub.f32 0.0, %v99
    %v116 = vsub.f32 0.0, %v100
    %v117 = vsub.f32 0.0, %v101
    %v118 = vmul.f32 %v102, 1.442695
    %v119 = vpow.pop %v118
    %v120 = vmul.f32 %v103, 1.442695
    %v121 = vpow.pop %v120
    %v122 = vmul.f32 %v104, 1.442695
    %v123 = vpow.pop %v122
    %v124 = vmul.f32 %v105, 1.442695
    %v125 = vpow.pop %v124
    %v126 = vmul.f32 %v106, 1.442695
    %v127 = vpow.pop %v126
    %v128 = vmul.f32 %v107, 1.442695
    %v129 = vpow.pop %v128
    %v130 = vmul.f32 %v108, 1.442695
    %v131 = vpow.pop %v130
    %v132 = vmul.f32 %v109, 1.442695
    %v133 = vpow.pop %v132
    %v134 = vmul.f32 %v110, 1.442695
    %v135 = vpow.pop %v134
    %v136 = vmul.f32 %v111, 1.442695
    %v137 = vpow.pop %v136
    %v138 = vmul.f32 %v112, 1.442695
    %v139 = vpow.pop %v138
    %v140 = vmul.f32 %v113, 1.442695
    %v141 = vpow.pop %v140
    %v142 = vmul.f32 %v114, 1.442695
    %v143 = vpow.pop %v142
    %v144 = vmul.f32 %v115, 1.442695
    %v145 = vpow.pop %v144
    %v146 = vmul.f32 %v116, 1.442695
    %v147 = vpow.pop %v146
    %v148 = vmul.f32 %v117, 1.442695
    %v149 = vpow.pop %v148
    %v150 = vadd.f32 %v119, 1.0
    %v151 = vadd.f32 %v121, 1.0
    %v152 = vadd.f32 %v123, 1.0
    %v153 = vadd.f32 %v125, 1.0
    %v154 = vadd.f32 %v127, 1.0
    %v155 = vadd.f32 %v129, 1.0
    %v156 = vadd.f32 %v131, 1.0
    %v157 = vadd.f32 %v133, 1.0
    %v158 = vadd.f32 %v135, 1.0
    %v159 = vadd.f32 %v137, 1.0
    %v160 = vadd.f32 %v139, 1.0
    %v161 = vadd.f32 %v141, 1.0
    %v162 = vadd.f32 %v143, 1.0
    %v163 = vadd.f32 %v145, 1.0
    %v164 = vadd.f32 %v147, 1.0
    %v165 = vadd.f32 %v149, 1.0
    %v166 = vlog2.pop %v150
    %v167 = vmul.f32 %v166, 0.6931472
    %v168 = vlog2.pop %v151
    %v169 = vmul.f32 %v168, 0.6931472
    %v170 = vlog2.pop %v152
    %v171 = vmul.f32 %v170, 0.6931472
    %v172 = vlog2.pop %v153
    %v173 = vmul.f32 %v172, 0.6931472
    %v174 = vlog2.pop %v154
    %v175 = vmul.f32 %v174, 0.6931472
    %v176 = vlog2.pop %v155
    %v177 = vmul.f32 %v176, 0.6931472
    %v178 = vlog2.pop %v156
    %v179 = vmul.f32 %v178, 0.6931472
    %v180 = vlog2.pop %v157
    %v181 = vmul.f32 %v180, 0.6931472
    %v182 = vlog2.pop %v158
    %v183 = vmul.f32 %v182, 0.6931472
    %v184 = vlog2.pop %v159
    %v185 = vmul.f32 %v184, 0.6931472
    %v186 = vlog2.pop %v160
    %v187 = vmul.f32 %v186, 0.6931472
    %v188 = vlog2.pop %v161
    %v189 = vmul.f32 %v188, 0.6931472
    %v190 = vlog2.pop %v162
    %v191 = vmul.f32 %v190, 0.6931472
    %v192 = vlog2.pop %v163
    %v193 = vmul.f32 %v192, 0.6931472
    %v194 = vlog2.pop %v164
    %v195 = vmul.f32 %v194, 0.6931472
    %v196 = vlog2.pop %v165
    %v197 = vmul.f32 %v196, 0.6931472
    %v198 = vadd.f32 %v70, %v167
    %v199 = vadd.f32 %v71, %v169
    %v200 = vadd.f32 %v72, %v171
    %v201 = vadd.f32 %v73, %v173
    %v202 = vadd.f32 %v74, %v175
    %v203 = vadd.f32 %v75, %v177
    %v204 = vadd.f32 %v76, %v179
    %v205 = vadd.f32 %v77, %v181
    %v206 = vadd.f32 %v78, %v183
    %v207 = vadd.f32 %v79, %v185
    %v208 = vadd.f32 %v80, %v187
    %v209 = vadd.f32 %v81, %v189
    %v210 = vadd.f32 %v82, %v191
    %v211 = vadd.f32 %v83, %v193
    %v212 = vadd.f32 %v84, %v195
    %v213 = vadd.f32 %v85, %v197
    %v214 = vld [vmem:[#allocation2] sm:$0xff]
    %v215 = vld [vmem:[#allocation3] sm:$0xff]
    %216 = vmatpush.xpose.msra.mxu0 %v213
    %217 = vmatpush.xpose.msra.mxu0 %v212
    %218 = vmatpush.xpose.msra.mxu0 %v211
    %219 = vmatpush.xpose.msra.mxu0 %v210
    %220 = vmatpush.xpose.msra.mxu0 %v209
    %221 = vmatpush.xpose.msra.mxu0 %v208
    %222 = vmatpush.xpose.msra.mxu0 %v207
    %223 = vmatpush.xpose.msra.mxu0 %v206
    %224 = vmatpush.xpose.msra.mxu0 %v205
    %225 = vmatpush.xpose.msra.mxu0 %v204
    %226 = vmatpush.xpose.msra.mxu0 %v203
    %227 = vmatpush.xpose.msra.mxu0 %v202
    %228 = vmatpush.xpose.msra.mxu0 %v201
    %229 = vmatpush.xpose.msra.mxu0 %v200
    %230 = vmatpush.xpose.msra.mxu0 %v199
    %231 = vmatpush.xpose.msra.mxu0 %v198
    %232 = vmatmul.f32.gmra.mxu0 %v215
    %v233 = vpop.f32.mrf.mxu0
    %v234 = vadd.f32 0.0, %v233
    %235 = vdwg.mxu0
    %v236 = vadd.f32 %v214, %v234
    %237 = vst [vmem:[#allocation2] sm:$0xff] %v236
    // Predicated region
    $region26: #{tpu_custom_call.1} parent=1 // pred_check
      %p238 = pneg %p45
    $region27: #{tpu_custom_call.1} parent=1 // pred_check_branch
      %240 = sbr.rel (%p238) target = $region29
    $region28: #{tpu_custom_call.1} parent=1 // pred_region
      %v241 = vld [vmem:[#allocation2] sm:$0xff]
      %242 = vst [vmem:[#allocation8] sm:$0xff] %v241
    $region29: #{tpu_custom_call.1} parent=1 // pred_fallthru
      _
    // Predicated region
    $region30: #{tpu_custom_call.1} parent=1 // pred_check
      _
    $region31: #{tpu_custom_call.1} parent=1 // pred_check_branch
      %244 = sbr.rel (0) target = $region33
    $region32: #{tpu_custom_call.1} parent=1 // pred_region
      %246 = vsyncadd [#allocation5], 0
      %s248 = sshll.u32 [#allocation8], 4
      %s249 = int_to_ptr.vmem [resolvable:$true] %s248
      %s250 = sshll.u32 %s3, 4
      %s251 = int_to_ptr.hbm [resolvable:$true] %s250
      %253 = dma.vmem_to_hbm [thread:$0]  %s249, 128, %s251, [#allocation5]
    $region33: #{tpu_custom_call.1} parent=1 // pred_fallthru
      _
    // Predicated region
    $region34: #{tpu_custom_call.1} parent=1 // pred_check
      _
    $region35: #{tpu_custom_call.1} parent=1 // pred_check_branch
      %255 = sbr.rel (0) target = $region37
    $region36: #{tpu_custom_call.1} parent=1 // pred_region
      %257 = dma.done [#allocation5], 128
    $region37: #{tpu_custom_call.1} parent=1 // pred_fallthru
      _
    %258 = vsyncpa [#allocation4], 1
    %259 = vsyncpa [#allocation7], 1
    %260 = vsyncpa [#allocation5], 1

</llo_original>
